<compile_context>
chip_gen: v6e
topology: v6e:2x2x1
jax: 0.10.0
libtpu: 0.0.40
codegen_flags: <defaults>
</compile_context>

<pallas_src>
import math

import jax
import jax.numpy as jnp
from jax.experimental import pallas as pl
from jax.experimental.pallas import tpu as pltpu


def _round_up(x, m):
    return ((x + m - 1) // m) * m


def outconv_heads(x, w_rec, b_rec, w_mask, b_mask, w_seg, b_seg, *,
                  ts_max=16384, min_hw_tiles=4, bn_max=8, out_dtype=None):
    """Fused multihead 1x1-conv + sigmoid on an NCHW input.

    x:       (N, Cin, H, W)
    w_*:     (Cout_head, Cin)   b_*: (Cout_head, 1)
    returns  (rec, mask, seg) each NCHW with its head's channel count.
    """
    N, Cin, H, W = x.shape
    HW = H * W
    c_rec, c_mask, c_seg = w_rec.shape[0], w_mask.shape[0], w_seg.shape[0]
    dtype_out = x.dtype if out_dtype is None else out_dtype

    # ---- Spatial (lane) tiling: pad HW to 128, split evenly into nt tiles. --
    hw128 = _round_up(HW, 128)
    if hw128 <= ts_max:
        nt = 1                                   # single spatial tile
    else:
        # keep >= min_hw_tiles tiles so v7x's 2 TCs + double buffering stay busy
        nt = max(pl.cdiv(hw128, ts_max), min_hw_tiles)
    ts = _round_up(pl.cdiv(hw128, nt), 128)      # multiple of 128 (lane rule)
    hw_pad = nt * ts                             # waste <= nt*127 lanes

    # ---- Batch blocking: amortize per-step overhead when tiles are small. --
    bn_cap = max(1, min(bn_max, ts_max // ts))
    bn = 1
    for d in range(min(N, bn_cap), 0, -1):
        if N % d == 0:
            bn = d
            break

    # ---- Fuse the three heads into one weight matrix (8-aligned row blocks).
    o_rec = 0
    o_mask = _round_up(c_rec, 8)
    o_seg = o_mask + _round_up(c_mask, 8)
    rows = o_seg + c_seg
    w_fused = jnp.zeros((rows, Cin), jnp.float32)
    w_fused = w_fused.at[o_rec:o_rec + c_rec].set(w_rec.astype(jnp.float32))
    w_fused = w_fused.at[o_mask:o_mask + c_mask].set(w_mask.astype(jnp.float32))
    w_fused = w_fused.at[o_seg:o_seg + c_seg].set(w_seg.astype(jnp.float32))
    b_fused = jnp.zeros((rows, 1), jnp.float32)
    b_fused = b_fused.at[o_rec:o_rec + c_rec].set(b_rec.astype(jnp.float32))
    b_fused = b_fused.at[o_mask:o_mask + c_mask].set(b_mask.astype(jnp.float32))
    b_fused = b_fused.at[o_seg:o_seg + c_seg].set(b_seg.astype(jnp.float32))

    x_flat = x.reshape(N, Cin, HW)
    if hw_pad != HW:
        x_flat = jnp.pad(x_flat, ((0, 0), (0, 0), (0, hw_pad - HW)))

    grid = (N // bn, nt)

    def kernel(x_ref, w_ref, b_ref, rec_ref, mask_ref, seg_ref):
        # x_ref:   (bn, Cin, ts)   one batch block, one spatial tile
        # w_ref:   (rows, Cin)     fused, resident
        # b_ref:   (rows, 1)
        # out refs:(bn, Cout_head, ts), lane-dense (ts multiple of 128)
        w = w_ref[...]
        b = b_ref[...]
        for i in range(bn):                       # bn is a static Python int
            acc = jnp.dot(w, x_ref[i], preferred_element_type=jnp.float32)
            y = jax.nn.sigmoid(acc + b)
            rec_ref[i] = y[o_rec:o_rec + c_rec].astype(rec_ref.dtype)
            mask_ref[i] = y[o_mask:o_mask + c_mask].astype(mask_ref.dtype)
            seg_ref[i] = y[o_seg:o_seg + c_seg].astype(seg_ref.dtype)

    def x_map(n, s):
        return (n, 0, s)

    def w_map(n, s):
        return (0, 0)

    out_shapes = (
        jax.ShapeDtypeStruct((N, c_rec, hw_pad), dtype_out),
        jax.ShapeDtypeStruct((N, c_mask, hw_pad), dtype_out),
        jax.ShapeDtypeStruct((N, c_seg, hw_pad), dtype_out),
    )

    rec, mask, seg = pl.pallas_call(
        kernel,
        out_shape=out_shapes,
        grid_spec=pltpu.PrefetchScalarGridSpec(
            num_scalar_prefetch=0,
            grid=grid,
            in_specs=[
                pl.BlockSpec((bn, Cin, ts), x_map),
                pl.BlockSpec((rows, Cin), w_map),
                pl.BlockSpec((rows, 1), w_map),
            ],
            out_specs=[
                pl.BlockSpec((bn, c_rec, ts), x_map),
                pl.BlockSpec((bn, c_mask, ts), x_map),
                pl.BlockSpec((bn, c_seg, ts), x_map),
            ],
        ),
        compiler_params=pltpu.CompilerParams(
            dimension_semantics=("parallel", "parallel"),
            vmem_limit_bytes=32 * 1024 * 1024,
        ),
    )(x_flat, w_fused, b_fused)

    def unflat(y, c):
        return y[:, :, :HW].reshape(N, c, H, W)

    return unflat(rec, c_rec), unflat(mask, c_mask), unflat(seg, c_seg)


class OutConvPallas:
    """JAX/Pallas re-implementation of OutConv (multihead, no self-guide)."""

    def __init__(self, key, in_channels, out_channels, n_channels):
        self.in_channels = in_channels
        self.n_class = out_channels
        self.n_channels = n_channels

        self.c_rec = n_channels
        self.c_mask = out_channels * n_channels * 2
        self.c_seg = out_channels

        # Deterministic init mimicking PyTorch Conv2d default (uniform in
        # [-1/sqrt(fan_in), 1/sqrt(fan_in)], fan_in = in_channels for 1x1).
        bound = 1.0 / math.sqrt(in_channels)
        ks = jax.random.split(key, 6)

        def w_init(k, cout):
            # (Cout, Cin): PyTorch (Cout, Cin, 1, 1) squeezed -> NCHW-native.
            return jax.random.uniform(k, (cout, in_channels), jnp.float32,
                                      -bound, bound)

        def b_init(k, cout):
            return jax.random.uniform(k, (cout, 1), jnp.float32, -bound, bound)

        self.w_rec, self.b_rec = w_init(ks[0], self.c_rec), b_init(ks[1], self.c_rec)
        self.w_mask, self.b_mask = w_init(ks[2], self.c_mask), b_init(ks[3], self.c_mask)
        self.w_seg, self.b_seg = w_init(ks[4], self.c_seg), b_init(ks[5], self.c_seg)

    def __call__(self, x):
        # x: (N, Cin, H, W)  -- NCHW, matching the PyTorch module.
        reconstruct_volume, mask_head, segment_volume = outconv_heads(
            x,
            self.w_rec, self.b_rec,
            self.w_mask, self.b_mask,
            self.w_seg, self.b_seg,
        )

        result_dict = {
            'segment_volume': segment_volume,
            'reconstruct_volume': reconstruct_volume,
        }
        nc, ncl = self.n_channels, self.n_class
        for i in range(ncl):
            str_class = 'class_' + str(i + 1) + '_'
            result_dict[str_class + 'foreground'] = \
                mask_head[:, i * nc:(i + 1) * nc]
            result_dict[str_class + 'background'] = \
                mask_head[:, i * nc + nc * ncl:(i + 1) * nc + nc * ncl]
        return result_dict

    # Pure-JAX reference (same math, no Pallas) for correctness checking.
    def reference(self, x):
        def head(w, b):
            y = jnp.einsum('oc,nchw->nohw', w, x) + b.reshape(1, -1, 1, 1)
            return jax.nn.sigmoid(y)

        return (head(self.w_rec, self.b_rec),
                head(self.w_mask, self.b_mask),
                head(self.w_seg, self.b_seg))


# TODO(synk): the SELF_GUIDE_OUTPUT=True branch depends on Attention_block,
# which is not defined in the provided module source, so it is not implemented.

if __name__ == "__main__":
    key = jax.random.PRNGKey(0)
    k_param, k_x = jax.random.split(key)

    N, Cin, H, W = 2, 4, 16, 16        # batch=2, in_channels=4, spatial=16
    out_channels = 3                   # n_class
    n_channels = 4

    model = OutConvPallas(k_param, Cin, out_channels, n_channels)
    x = jax.random.normal(k_x, (N, Cin, H, W), jnp.float32)

    result = model(x)
    jax.block_until_ready(result)

    # Correctness check against a plain-JAX reference of the three heads.
    rec_ref, mask_ref, seg_ref = model.reference(x)
    mask_got = jnp.concatenate(
        [result[f'class_{i+1}_foreground'] for i in range(out_channels)]
        + [result[f'class_{i+1}_background'] for i in range(out_channels)],
        axis=1)

    assert result['reconstruct_volume'].shape == rec_ref.shape
    assert result['segment_volume'].shape == seg_ref.shape
    assert mask_got.shape == mask_ref.shape
    assert jnp.max(jnp.abs(result['reconstruct_volume'] - rec_ref)) < 1e-5
    assert jnp.max(jnp.abs(result['segment_volume'] - seg_ref)) < 1e-5
    assert jnp.max(jnp.abs(mask_got - mask_ref)) < 1e-5

    # Sanity on shapes matching the PyTorch module semantics.
    assert result['segment_volume'].shape == (N, out_channels, H, W)
    assert result['reconstruct_volume'].shape == (N, n_channels, H, W)
    assert result['class_1_foreground'].shape == (N, n_channels, H, W)
    assert result['class_1_background'].shape == (N, n_channels, H, W)

    print("KERNEL_OK")
</pallas_src>

<mosaic_0001>
module attributes {stable_mosaic.version = 11 : i64} {
  func.func @kernel(%arg0: i32, %arg1: i32, %arg2: memref<2x4x256xf32, #tpu.memory_space<vmem>>, %arg3: memref<35x4xf32, #tpu.memory_space<vmem>>, %arg4: memref<35x1xf32, #tpu.memory_space<vmem>>, %arg5: memref<2x4x256xf32, #tpu.memory_space<vmem>>, %arg6: memref<2x24x256xf32, #tpu.memory_space<vmem>>, %arg7: memref<2x3x256xf32, #tpu.memory_space<vmem>>) attributes {dimension_semantics = [#tpu.dimension_semantics<parallel>, #tpu.dimension_semantics<parallel>], iteration_bounds = array<i64: 1, 1>, scalar_prefetch = 0 : i64, scratch_operands = 0 : i64, tpu.core_type = #tpu.core_type<tc>, window_params = [{transform_indices = @transform_0, window_bounds = array<i64: 2, 4, 256>}, {pipeline_mode = #tpu.pipeline_mode<synchronous>, transform_indices = @transform_1, window_bounds = array<i64: 35, 4>}, {pipeline_mode = #tpu.pipeline_mode<synchronous>, transform_indices = @transform_2, window_bounds = array<i64: 35, 1>}, {transform_indices = @transform_3, window_bounds = array<i64: 2, 4, 256>}, {transform_indices = @transform_4, window_bounds = array<i64: 2, 24, 256>}, {transform_indices = @transform_5, window_bounds = array<i64: 2, 3, 256>}]} {
    %c0 = arith.constant 0 : index
    %c0_0 = arith.constant 0 : index
    %0 = vector.load %arg3[%c0, %c0_0] : memref<35x4xf32, #tpu.memory_space<vmem>>, vector<35x4xf32>
    %c0_1 = arith.constant 0 : index
    %c0_2 = arith.constant 0 : index
    %1 = vector.load %arg4[%c0_1, %c0_2] : memref<35x1xf32, #tpu.memory_space<vmem>>, vector<35x1xf32>
    %c0_3 = arith.constant 0 : index
    %c0_4 = arith.constant 0 : index
    %c0_5 = arith.constant 0 : index
    %2 = vector.load %arg2[%c0_3, %c0_4, %c0_5] : memref<2x4x256xf32, #tpu.memory_space<vmem>>, vector<1x4x256xf32>
    %3 = vector.shape_cast %2 : vector<1x4x256xf32> to vector<4x256xf32>
    %cst = arith.constant dense<0.000000e+00> : vector<35x256xf32>
    %4 = tpu.matmul %0, %3, %cst {dimension_numbers = #tpu.dot_dimension_numbers<[1], [0], [0], [1], [0, 0, 1, 1], [], []>} : vector<35x4xf32>, vector<4x256xf32>, vector<35x256xf32> -> vector<35x256xf32>
    %5 = vector.broadcast %1 : vector<35x1xf32> to vector<35x256xf32>
    %6 = arith.addf %4, %5 : vector<35x256xf32>
    %7 = arith.negf %6 : vector<35x256xf32>
    %8 = math.exp %7 : vector<35x256xf32>
    %cst_6 = arith.constant 1.000000e+00 : f32
    %9 = vector.broadcast %cst_6 : f32 to vector<35x256xf32>
    %10 = arith.addf %9, %8 : vector<35x256xf32>
    %11 = arith.divf %9, %10 : vector<35x256xf32>
    %12 = vector.extract_strided_slice %11 {offsets = [0, 0], sizes = [4, 256], strides = [1, 1]} : vector<35x256xf32> to vector<4x256xf32>
    %c0_7 = arith.constant 0 : index
    %c0_8 = arith.constant 0 : index
    %c0_9 = arith.constant 0 : index
    %13 = vector.load %arg5[%c0_7, %c0_8, %c0_9] : memref<2x4x256xf32, #tpu.memory_space<vmem>>, vector<1x4x256xf32>
    %14 = vector.shape_cast %13 : vector<1x4x256xf32> to vector<4x256xf32>
    %15 = vector.shape_cast %12 : vector<4x256xf32> to vector<1x4x256xf32>
    tpu.vector_store %arg5[%c0_7, %c0_8, %c0_9], %15 {strides = array<i32>} : memref<2x4x256xf32, #tpu.memory_space<vmem>>, vector<1x4x256xf32>,
    %16 = vector.extract_strided_slice %11 {offsets = [8, 0], sizes = [24, 256], strides = [1, 1]} : vector<35x256xf32> to vector<24x256xf32>
    %c0_10 = arith.constant 0 : index
    %c0_11 = arith.constant 0 : index
    %c0_12 = arith.constant 0 : index
    %17 = vector.load %arg6[%c0_10, %c0_11, %c0_12] : memref<2x24x256xf32, #tpu.memory_space<vmem>>, vector<1x24x256xf32>
    %18 = vector.shape_cast %17 : vector<1x24x256xf32> to vector<24x256xf32>
    %19 = vector.shape_cast %16 : vector<24x256xf32> to vector<1x24x256xf32>
    tpu.vector_store %arg6[%c0_10, %c0_11, %c0_12], %19 {strides = array<i32>} : memref<2x24x256xf32, #tpu.memory_space<vmem>>, vector<1x24x256xf32>,
    %20 = vector.extract_strided_slice %11 {offsets = [32, 0], sizes = [3, 256], strides = [1, 1]} : vector<35x256xf32> to vector<3x256xf32>
    %c0_13 = arith.constant 0 : index
    %c0_14 = arith.constant 0 : index
    %c0_15 = arith.constant 0 : index
    %21 = vector.load %arg7[%c0_13, %c0_14, %c0_15] : memref<2x3x256xf32, #tpu.memory_space<vmem>>, vector<1x3x256xf32>
    %22 = vector.shape_cast %21 : vector<1x3x256xf32> to vector<3x256xf32>
    %23 = vector.shape_cast %20 : vector<3x256xf32> to vector<1x3x256xf32>
    tpu.vector_store %arg7[%c0_13, %c0_14, %c0_15], %23 {strides = array<i32>} : memref<2x3x256xf32, #tpu.memory_space<vmem>>, vector<1x3x256xf32>,
    %c1 = arith.constant 1 : index
    %c0_16 = arith.constant 0 : index
    %c0_17 = arith.constant 0 : index
    %24 = vector.load %arg2[%c1, %c0_16, %c0_17] : memref<2x4x256xf32, #tpu.memory_space<vmem>>, vector<1x4x256xf32>
    %25 = vector.shape_cast %24 : vector<1x4x256xf32> to vector<4x256xf32>
    %cst_18 = arith.constant dense<0.000000e+00> : vector<35x256xf32>
    %26 = tpu.matmul %0, %25, %cst_18 {dimension_numbers = #tpu.dot_dimension_numbers<[1], [0], [0], [1], [0, 0, 1, 1], [], []>} : vector<35x4xf32>, vector<4x256xf32>, vector<35x256xf32> -> vector<35x256xf32>
    %27 = vector.broadcast %1 : vector<35x1xf32> to vector<35x256xf32>
    %28 = arith.addf %26, %27 : vector<35x256xf32>
    %29 = arith.negf %28 : vector<35x256xf32>
    %30 = math.exp %29 : vector<35x256xf32>
    %cst_19 = arith.constant 1.000000e+00 : f32
    %31 = vector.broadcast %cst_19 : f32 to vector<35x256xf32>
    %32 = arith.addf %31, %30 : vector<35x256xf32>
    %33 = arith.divf %31, %32 : vector<35x256xf32>
    %34 = vector.extract_strided_slice %33 {offsets = [0, 0], sizes = [4, 256], strides = [1, 1]} : vector<35x256xf32> to vector<4x256xf32>
    %c1_20 = arith.constant 1 : index
    %c0_21 = arith.constant 0 : index
    %c0_22 = arith.constant 0 : index
    %35 = vector.load %arg5[%c1_20, %c0_21, %c0_22] : memref<2x4x256xf32, #tpu.memory_space<vmem>>, vector<1x4x256xf32>
    %36 = vector.shape_cast %35 : vector<1x4x256xf32> to vector<4x256xf32>
    %37 = vector.shape_cast %34 : vector<4x256xf32> to vector<1x4x256xf32>
    tpu.vector_store %arg5[%c1_20, %c0_21, %c0_22], %37 {strides = array<i32>} : memref<2x4x256xf32, #tpu.memory_space<vmem>>, vector<1x4x256xf32>,
    %38 = vector.extract_strided_slice %33 {offsets = [8, 0], sizes = [24, 256], strides = [1, 1]} : vector<35x256xf32> to vector<24x256xf32>
    %c1_23 = arith.constant 1 : index
    %c0_24 = arith.constant 0 : index
    %c0_25 = arith.constant 0 : index
    %39 = vector.load %arg6[%c1_23, %c0_24, %c0_25] : memref<2x24x256xf32, #tpu.memory_space<vmem>>, vector<1x24x256xf32>
    %40 = vector.shape_cast %39 : vector<1x24x256xf32> to vector<24x256xf32>
    %41 = vector.shape_cast %38 : vector<24x256xf32> to vector<1x24x256xf32>
    tpu.vector_store %arg6[%c1_23, %c0_24, %c0_25], %41 {strides = array<i32>} : memref<2x24x256xf32, #tpu.memory_space<vmem>>, vector<1x24x256xf32>,
    %42 = vector.extract_strided_slice %33 {offsets = [32, 0], sizes = [3, 256], strides = [1, 1]} : vector<35x256xf32> to vector<3x256xf32>
    %c1_26 = arith.constant 1 : index
    %c0_27 = arith.constant 0 : index
    %c0_28 = arith.constant 0 : index
    %43 = vector.load %arg7[%c1_26, %c0_27, %c0_28] : memref<2x3x256xf32, #tpu.memory_space<vmem>>, vector<1x3x256xf32>
    %44 = vector.shape_cast %43 : vector<1x3x256xf32> to vector<3x256xf32>
    %45 = vector.shape_cast %42 : vector<3x256xf32> to vector<1x3x256xf32>
    tpu.vector_store %arg7[%c1_26, %c0_27, %c0_28], %45 {strides = array<i32>} : memref<2x3x256xf32, #tpu.memory_space<vmem>>, vector<1x3x256xf32>,
    return
  }
  func.func @transform_0(%arg0: i32, %arg1: i32) -> (i32, i32, i32) {
    %c0_i32 = arith.constant 0 : i32
    %c0_i32_0 = arith.constant 0 : i32
    return %arg0, %c0_i32, %arg1 : i32, i32, i32
  }
  func.func @transform_1(%arg0: i32, %arg1: i32) -> (i32, i32) {
    %c0_i32 = arith.constant 0 : i32
    %c0_i32_0 = arith.constant 0 : i32
    %c0_i32_1 = arith.constant 0 : i32
    return %c0_i32, %c0_i32_0 : i32, i32
  }
  func.func @transform_2(%arg0: i32, %arg1: i32) -> (i32, i32) {
    %c0_i32 = arith.constant 0 : i32
    %c0_i32_0 = arith.constant 0 : i32
    %c0_i32_1 = arith.constant 0 : i32
    return %c0_i32, %c0_i32_0 : i32, i32
  }
  func.func @transform_3(%arg0: i32, %arg1: i32) -> (i32, i32, i32) {
    %c0_i32 = arith.constant 0 : i32
    %c0_i32_0 = arith.constant 0 : i32
    return %arg0, %c0_i32, %arg1 : i32, i32, i32
  }
  func.func @transform_4(%arg0: i32, %arg1: i32) -> (i32, i32, i32) {
    %c0_i32 = arith.constant 0 : i32
    %c0_i32_0 = arith.constant 0 : i32
    return %arg0, %c0_i32, %arg1 : i32, i32, i32
  }
  func.func @transform_5(%arg0: i32, %arg1: i32) -> (i32, i32, i32) {
    %c0_i32 = arith.constant 0 : i32
    %c0_i32_0 = arith.constant 0 : i32
    return %arg0, %c0_i32, %arg1 : i32, i32, i32
  }
}

</mosaic_0001>

<llo_original>
// kernel: tpu_custom_call.1
$region0: #{tpu_custom_call.1}
  #allocation0 [shape = 'u32[]', space=smem, size = 0x4, offset = 0x4, fixed_abs, tag = 'smem constant byte address 0x4 - core index']
  #allocation1 [shape = 'u32[144,128]{1,0:T(1,128)}', space=vmem, size = 0x12000, scoped, tag = 'internal scratch']
  %s0 = inlined_call_operand.vmem [shape: f32[2,4,256], index: 0, kind: input, shape index: {}]
  %s1 = inlined_call_operand.vmem [shape: f32[35,4], index: 1, kind: input, shape index: {}]
  %s2 = inlined_call_operand.vmem [shape: f32[35,1], index: 2, kind: input, shape index: {}]
  %s3 = inlined_call_operand.hbm [shape: f32[2,4,256], index: 3, kind: output, shape index: {0}]
  %s4 = inlined_call_operand.hbm [shape: f32[2,24,256], index: 4, kind: output, shape index: {1}]
  %s5 = inlined_call_operand.vmem [shape: f32[2,3,256], index: 5, kind: output, shape index: {2}]
  %6 = xla_tuple %s3, %s4, %s5
  %s7 = sld [smem:[#allocation0]]
  $region38: #{tpu_custom_call.1} parent=0
    _
  %s9 = ssub.s32 1, %s7
  %s10 = scalar_select 0, %s9, %s7
  $region1: #{tpu_custom_call.1} parent=0
    #allocation2 [shape = 'u8[8192]{0}', space=vmem, size = 0x2000, scoped, tag = 'output window, operand 0, single buffered']
    #allocation3 [shape = 's32[1]{0}', space=sflag, size = 0x4, scoped, tag = 'scoped memory for tpu_custom_call.1']
    #allocation4 [shape = 'u8[49152]{0}', space=vmem, size = 0xc000, scoped, tag = 'output window, operand 1, single buffered']
    #allocation5 [shape = 's32[1]{0}', space=sflag, size = 0x4, scoped, tag = 'scoped memory for tpu_custom_call.1']
    %11 = vsyncpa [#allocation3], 0
    %12 = vsyncpa [#allocation5], 0
    // Predicated region
    $region2: #{tpu_custom_call.1} parent=1 // pred_check
      _
    $region3: #{tpu_custom_call.1} parent=1 // pred_check_branch
      %14 = sbr.rel (0) target = $region5
    $region4: #{tpu_custom_call.1} parent=1 // pred_region
      _
    $region5: #{tpu_custom_call.1} parent=1 // pred_fallthru
      _
    // Predicated region
    $region6: #{tpu_custom_call.1} parent=1 // pred_check
      _
    $region7: #{tpu_custom_call.1} parent=1 // pred_check_branch
      %16 = sbr.rel (0) target = $region9
    $region8: #{tpu_custom_call.1} parent=1 // pred_region
      _
    $region9: #{tpu_custom_call.1} parent=1 // pred_fallthru
      _
    // Predicated region
    $region10: #{tpu_custom_call.1} parent=1 // pred_check
      _
    $region11: #{tpu_custom_call.1} parent=1 // pred_check_branch
      %18 = sbr.rel (0) target = $region13
    $region12: #{tpu_custom_call.1} parent=1 // pred_region
      _
    $region13: #{tpu_custom_call.1} parent=1 // pred_fallthru
      _
    %v19 = vld [vmem:[%s1] sm:$0xff]
    %v20 = vld [vmem:[%s1 + $0x8] sm:$0xff]
    %v21 = vld [vmem:[%s1 + $0x10] sm:$0xff]
    %v22 = vld [vmem:[%s1 + $0x18] sm:$0xff]
    %v23 = vld [vmem:[%s1 + $0x20] sm:$0x7]
    %v24 = vld [vmem:[%s2] sm:$0xff]
    %v25 = vld [vmem:[%s2 + $0x8] sm:$0xff]
    %v26 = vld [vmem:[%s2 + $0x10] sm:$0xff]
    %v27 = vld [vmem:[%s2 + $0x18] sm:$0xff]
    %v28 = vld [vmem:[%s2 + $0x20] sm:$0x7]
    %v29 = vld [vmem:[%s0] sm:$0xff]
    %31 = vset.pattern.permute.xlu0 0
    %32 = vperm.xlu0 %31, %v24
    %v33 = vpop.permute.xlu0 %32
    %36 = vset.pattern.permute.xlu0 0
    %37 = vperm.xlu0 %36, %v25
    %v38 = vpop.permute.xlu0 %37
    %41 = vset.pattern.permute.xlu0 0
    %42 = vperm.xlu0 %41, %v26
    %v43 = vpop.permute.xlu0 %42
    %46 = vset.pattern.permute.xlu0 0
    %47 = vperm.xlu0 %46, %v27
    %v48 = vpop.permute.xlu0 %47
    %51 = vset.pattern.permute.xlu0 0
    %52 = vperm.xlu0 %51, %v28
    %v53 = vpop.permute.xlu0 %52
    %v56 = vcombine.high %v29, %v29
    %vm57 = vcmask 31744
    %v59 = vsel %vm57, %v19, 0
    %v62 = vsel %vm57, %v20, 0
    %v65 = vsel %vm57, %v21, 0
    %v68 = vsel %vm57, %v22, 0
    %v71 = vsel %vm57, %v23, 0
    %vm73 = vcmask 1043456
    %v74 = vsel %vm73, %v29, 0
    %v76 = vsel %vm73, %v56, 0
    %78 = vmatprep.subr.mxu0 0.0
    %79 = vmatpush1.msra.mxu0 0.0
    %80 = vmatprep.subr.mxu0 0.0
    %81 = vmatpush1.msra.mxu0 0.0
    %82 = vmatprep.subr.mxu0 0.0
    %83 = vmatpush1.msra.mxu0 0.0
    %84 = vmatprep.subr.mxu0 0.0
    %85 = vmatpush1.msra.mxu0 0.0
    %86 = vmatprep.subr.mxu0 0.0
    %87 = vmatpush1.msra.mxu0 0.0
    %88 = vmatprep.subr.mxu0 0.0
    %89 = vmatpush1.msra.mxu0 0.0
    %90 = vmatprep.subr.mxu0 0.0
    %91 = vmatpush1.msra.mxu0 0.0
    %92 = vmatprep.subr.mxu0 0.0
    %93 = vmatpush1.msra.mxu0 0.0
    %94 = vmatprep.subr.mxu0 0.0
    %95 = vmatpush1.msra.mxu0 0.0
    %96 = vmatprep.subr.mxu0 0.0
    %97 = vmatpush1.msra.mxu0 0.0
    %98 = vmatprep.subr.mxu0 0.0
    %99 = vmatpush1.msra.mxu0 0.0
    %100 = vmatprep.subr.mxu0 0.0
    %101 = vmatpush1.msra.mxu0 0.0
    %102 = vmatprep.subr.mxu0 0.0
    %103 = vmatpush1.msra.mxu0 0.0
    %104 = vmatprep.subr.mxu0 0.0
    %105 = vmatpush1.msra.mxu0 0.0
    %106 = vmatprep.subr.mxu0 0.0
    %107 = vmatpush1.msra.mxu0 0.0
    %108 = vmatprep.subr.mxu0 %v76
    %109 = vmatpush1.msra.mxu0 %v74
    %110 = vmatprep.subr.mxu0 0.0
    %111 = vmatpush2.msra.mxu0 0.0
    %112 = vmatprep.subr.mxu0 0.0
    %113 = vmatpush2.msra.mxu0 0.0
    %114 = vmatprep.subr.mxu0 0.0
    %115 = vmatpush2.msra.mxu0 0.0
    %116 = vmatprep.subr.mxu0 0.0
    %117 = vmatpush2.msra.mxu0 0.0
    %118 = vmatprep.subr.mxu0 0.0
    %119 = vmatpush2.msra.mxu0 0.0
    %120 = vmatprep.subr.mxu0 0.0
    %121 = vmatpush2.msra.mxu0 0.0
    %122 = vmatprep.subr.mxu0 0.0
    %123 = vmatpush2.msra.mxu0 0.0
    %124 = vmatprep.subr.mxu0 0.0
    %125 = vmatpush2.msra.mxu0 0.0
    %126 = vmatprep.subr.mxu0 0.0
    %127 = vmatpush2.msra.mxu0 0.0
    %128 = vmatprep.subr.mxu0 0.0
    %129 = vmatpush2.msra.mxu0 0.0
    %130 = vmatprep.subr.mxu0 0.0
    %131 = vmatpush2.msra.mxu0 0.0
    %132 = vmatprep.subr.mxu0 0.0
    %133 = vmatpush2.msra.mxu0 0.0
    %134 = vmatprep.subr.mxu0 0.0
    %135 = vmatpush2.msra.mxu0 0.0
    %136 = vmatprep.subr.mxu0 0.0
    %137 = vmatpush2.msra.mxu0 0.0
    %138 = vmatprep.subr.mxu0 0.0
    %139 = vmatpush2.msra.mxu0 0.0
    %140 = vmatprep.subr.mxu0 0.0
    %141 = vmatpush2.msra.mxu0 0.0
    %142 = vmatprep.mubr.f32.mxu0 0.0
    %143 = vmatmul.mubr.f32.gmra.mxu0 %v59
    %v144 = vpop.f32.mrf.mxu0
    %v145 = vadd.f32 %v33, %v144
    %v146 = vpop.f32.mrf.mxu0
    %v147 = vadd.f32 %v33, %v146
    %148 = vmatprep.mubr.f32.mxu0 0.0
    %149 = vmatmul.mubr.f32.gmra.mxu0 %v62
    %v150 = vpop.f32.mrf.mxu0
    %v151 = vadd.f32 %v38, %v150
    %v152 = vpop.f32.mrf.mxu0
    %v153 = vadd.f32 %v38, %v152
    %154 = vmatprep.mubr.f32.mxu0 0.0
    %155 = vmatmul.mubr.f32.gmra.mxu0 %v65
    %v156 = vpop.f32.mrf.mxu0
    %v157 = vadd.f32 %v43, %v156
    %v158 = vpop.f32.mrf.mxu0
    %v159 = vadd.f32 %v43, %v158
    %160 = vmatprep.mubr.f32.mxu0 0.0
    %161 = vmatmul.mubr.f32.gmra.mxu0 %v68
    %v162 = vpop.f32.mrf.mxu0
    %v163 = vadd.f32 %v48, %v162
    %v164 = vpop.f32.mrf.mxu0
    %v165 = vadd.f32 %v48, %v164
    %166 = vmatprep.mubr.f32.mxu0 0.0
    %167 = vmatmul.mubr.f32.gmra.mxu0 %v71
    %v168 = vpop.f32.mrf.mxu0
    %v169 = vadd.f32 %v53, %v168
    %v170 = vpop.f32.mrf.mxu0
    %v171 = vadd.f32 %v53, %v170
    %172 = vdwg.mxu0
    %v173 = vxor.u32 %v145, 2147483648
    %v174 = vxor.u32 %v147, 2147483648
    %v175 = vxor.u32 %v151, 2147483648
    %v176 = vxor.u32 %v153, 2147483648
    %v177 = vxor.u32 %v157, 2147483648
    %v178 = vxor.u32 %v159, 2147483648
    %v179 = vxor.u32 %v163, 2147483648
    %v180 = vxor.u32 %v165, 2147483648
    %v181 = vxor.u32 %v169, 2147483648
    %v182 = vxor.u32 %v171, 2147483648
    %v183 = vmul.f32 %v173, 1.442695
    %v184 = vpow.pop %v183
    %v185 = vmul.f32 %v174, 1.442695
    %v186 = vpow.pop %v185
    %v187 = vmul.f32 %v175, 1.442695
    %v188 = vpow.pop %v187
    %v189 = vmul.f32 %v176, 1.442695
    %v190 = vpow.pop %v189
    %v191 = vmul.f32 %v177, 1.442695
    %v192 = vpow.pop %v191
    %v193 = vmul.f32 %v178, 1.442695
    %v194 = vpow.pop %v193
    %v195 = vmul.f32 %v179, 1.442695
    %v196 = vpow.pop %v195
    %v197 = vmul.f32 %v180, 1.442695
    %v198 = vpow.pop %v197
    %v199 = vmul.f32 %v181, 1.442695
    %v200 = vpow.pop %v199
    %v201 = vmul.f32 %v182, 1.442695
    %v202 = vpow.pop %v201
    %v203 = vadd.f32 %v184, 1.0
    %v204 = vadd.f32 %v186, 1.0
    %v205 = vadd.f32 %v188, 1.0
    %v206 = vadd.f32 %v190, 1.0
    %v207 = vadd.f32 %v192, 1.0
    %v208 = vadd.f32 %v194, 1.0
    %v209 = vadd.f32 %v196, 1.0
    %v210 = vadd.f32 %v198, 1.0
    %v211 = vadd.f32 %v200, 1.0
    %v212 = vadd.f32 %v202, 1.0
    %v213 = vrcp.pop %v203
    %v214 = vmul.f32 1.0, %v213
    %v215 = vrcp.pop %v204
    %v216 = vmul.f32 1.0, %v215
    %v217 = vrcp.pop %v205
    %v218 = vmul.f32 1.0, %v217
    %v219 = vrcp.pop %v206
    %v220 = vmul.f32 1.0, %v219
    %v221 = vrcp.pop %v207
    %v222 = vmul.f32 1.0, %v221
    %v223 = vrcp.pop %v208
    %v224 = vmul.f32 1.0, %v223
    %v225 = vrcp.pop %v209
    %v226 = vmul.f32 1.0, %v225
    %v227 = vrcp.pop %v210
    %v228 = vmul.f32 1.0, %v227
    %v229 = vrcp.pop %v211
    %v230 = vmul.f32 1.0, %v229
    %v231 = vrcp.pop %v212
    %v232 = vmul.f32 1.0, %v231
    %v235 = vcombine.low %v214, %v216
    %237 = vst [vmem:[#allocation2] sm:$0xff] %v235
    %238 = vst [vmem:[#allocation4] sm:$0xff] %v218
    %239 = vst [vmem:[#allocation4 + $0x8] sm:$0xff] %v220
    %240 = vst [vmem:[#allocation4 + $0x10] sm:$0xff] %v222
    %241 = vst [vmem:[#allocation4 + $0x18] sm:$0xff] %v224
    %242 = vst [vmem:[#allocation4 + $0x20] sm:$0xff] %v226
    %243 = vst [vmem:[#allocation4 + $0x28] sm:$0xff] %v228
    %v246 = vcombine.low %v230, %v232
    %248 = vst [vmem:[%s5] sm:$0x77] %v246
    %s249 = scalar_lea.vmem %s0, 8
    %v250 = vld [vmem:[%s249] sm:$0xff]
    %v252 = vcombine.high %v250, %v250
    %v253 = vsel %vm73, %v250, 0
    %v255 = vsel %vm73, %v252, 0
    %257 = vmatprep.subr.mxu0 0.0
    %258 = vmatpush1.msra.mxu0 0.0
    %259 = vmatprep.subr.mxu0 0.0
    %260 = vmatpush1.msra.mxu0 0.0
    %261 = vmatprep.subr.mxu0 0.0
    %262 = vmatpush1.msra.mxu0 0.0
    %263 = vmatprep.subr.mxu0 0.0
    %264 = vmatpush1.msra.mxu0 0.0
    %265 = vmatprep.subr.mxu0 0.0
    %266 = vmatpush1.msra.mxu0 0.0
    %267 = vmatprep.subr.mxu0 0.0
    %268 = vmatpush1.msra.mxu0 0.0
    %269 = vmatprep.subr.mxu0 0.0
    %270 = vmatpush1.msra.mxu0 0.0
    %271 = vmatprep.subr.mxu0 0.0
    %272 = vmatpush1.msra.mxu0 0.0
    %273 = vmatprep.subr.mxu0 0.0
    %274 = vmatpush1.msra.mxu0 0.0
    %275 = vmatprep.subr.mxu0 0.0
    %276 = vmatpush1.msra.mxu0 0.0
    %277 = vmatprep.subr.mxu0 0.0
    %278 = vmatpush1.msra.mxu0 0.0
    %279 = vmatprep.subr.mxu0 0.0
    %280 = vmatpush1.msra.mxu0 0.0
    %281 = vmatprep.subr.mxu0 0.0
    %282 = vmatpush1.msra.mxu0 0.0
    %283 = vmatprep.subr.mxu0 0.0
    %284 = vmatpush1.msra.mxu0 0.0
    %285 = vmatprep.subr.mxu0 0.0
    %286 = vmatpush1.msra.mxu0 0.0
    %287 = vmatprep.subr.mxu0 %v255
    %288 = vmatpush1.msra.mxu0 %v253
    %289 = vmatprep.subr.mxu0 0.0
    %290 = vmatpush2.msra.mxu0 0.0
    %291 = vmatprep.subr.mxu0 0.0
    %292 = vmatpush2.msra.mxu0 0.0
    %293 = vmatprep.subr.mxu0 0.0
    %294 = vmatpush2.msra.mxu0 0.0
    %295 = vmatprep.subr.mxu0 0.0
    %296 = vmatpush2.msra.mxu0 0.0
    %297 = vmatprep.subr.mxu0 0.0
    %298 = vmatpush2.msra.mxu0 0.0
    %299 = vmatprep.subr.mxu0 0.0
    %300 = vmatpush2.msra.mxu0 0.0
    %301 = vmatprep.subr.mxu0 0.0
    %302 = vmatpush2.msra.mxu0 0.0
    %303 = vmatprep.subr.mxu0 0.0
    %304 = vmatpush2.msra.mxu0 0.0
    %305 = vmatprep.subr.mxu0 0.0
    %306 = vmatpush2.msra.mxu0 0.0
    %307 = vmatprep.subr.mxu0 0.0
    %308 = vmatpush2.msra.mxu0 0.0
    %309 = vmatprep.subr.mxu0 0.0
    %310 = vmatpush2.msra.mxu0 0.0
    %311 = vmatprep.subr.mxu0 0.0
    %312 = vmatpush2.msra.mxu0 0.0
    %313 = vmatprep.subr.mxu0 0.0
    %314 = vmatpush2.msra.mxu0 0.0
    %315 = vmatprep.subr.mxu0 0.0
    %316 = vmatpush2.msra.mxu0 0.0
    %317 = vmatprep.subr.mxu0 0.0
    %318 = vmatpush2.msra.mxu0 0.0
    %319 = vmatprep.subr.mxu0 0.0
    %320 = vmatpush2.msra.mxu0 0.0
    %321 = vmatprep.mubr.f32.mxu0 0.0
    %322 = vmatmul.mubr.f32.gmra.mxu0 %v59
    %v323 = vpop.f32.mrf.mxu0
    %v324 = vadd.f32 %v33, %v323
    %v325 = vpop.f32.mrf.mxu0
    %v326 = vadd.f32 %v33, %v325
    %327 = vmatprep.mubr.f32.mxu0 0.0
    %328 = vmatmul.mubr.f32.gmra.mxu0 %v62
    %v329 = vpop.f32.mrf.mxu0
    %v330 = vadd.f32 %v38, %v329
    %v331 = vpop.f32.mrf.mxu0
    %v332 = vadd.f32 %v38, %v331
    %333 = vmatprep.mubr.f32.mxu0 0.0
    %334 = vmatmul.mubr.f32.gmra.mxu0 %v65
    %v335 = vpop.f32.mrf.mxu0
    %v336 = vadd.f32 %v43, %v335
    %v337 = vpop.f32.mrf.mxu0
    %v338 = vadd.f32 %v43, %v337
    %339 = vmatprep.mubr.f32.mxu0 0.0
    %340 = vmatmul.mubr.f32.gmra.mxu0 %v68
    %v341 = vpop.f32.mrf.mxu0
    %v342 = vadd.f32 %v48, %v341
    %v343 = vpop.f32.mrf.mxu0
    %v344 = vadd.f32 %v48, %v343
    %345 = vmatprep.mubr.f32.mxu0 0.0
    %346 = vmatmul.mubr.f32.gmra.mxu0 %v71
    %v347 = vpop.f32.mrf.mxu0
    %v348 = vadd.f32 %v53, %v347
    %v349 = vpop.f32.mrf.mxu0
    %v350 = vadd.f32 %v53, %v349
    %351 = vdwg.mxu0
    %v352 = vxor.u32 %v324, 2147483648
    %v353 = vxor.u32 %v326, 2147483648
    %v354 = vxor.u32 %v330, 2147483648
    %v355 = vxor.u32 %v332, 2147483648
    %v356 = vxor.u32 %v336, 2147483648
    %v357 = vxor.u32 %v338, 2147483648
    %v358 = vxor.u32 %v342, 2147483648
    %v359 = vxor.u32 %v344, 2147483648
    %v360 = vxor.u32 %v348, 2147483648
    %v361 = vxor.u32 %v350, 2147483648
    %v362 = vmul.f32 %v352, 1.442695
    %v363 = vpow.pop %v362
    %v364 = vmul.f32 %v353, 1.442695
    %v365 = vpow.pop %v364
    %v366 = vmul.f32 %v354, 1.442695
    %v367 = vpow.pop %v366
    %v368 = vmul.f32 %v355, 1.442695
    %v369 = vpow.pop %v368
    %v370 = vmul.f32 %v356, 1.442695
    %v371 = vpow.pop %v370
    %v372 = vmul.f32 %v357, 1.442695
    %v373 = vpow.pop %v372
    %v374 = vmul.f32 %v358, 1.442695
    %v375 = vpow.pop %v374
    %v376 = vmul.f32 %v359, 1.442695
    %v377 = vpow.pop %v376
    %v378 = vmul.f32 %v360, 1.442695
    %v379 = vpow.pop %v378
    %v380 = vmul.f32 %v361, 1.442695
    %v381 = vpow.pop %v380
    %v382 = vadd.f32 %v363, 1.0
    %v383 = vadd.f32 %v365, 1.0
    %v384 = vadd.f32 %v367, 1.0
    %v385 = vadd.f32 %v369, 1.0
    %v386 = vadd.f32 %v371, 1.0
    %v387 = vadd.f32 %v373, 1.0
    %v388 = vadd.f32 %v375, 1.0
    %v389 = vadd.f32 %v377, 1.0
    %v390 = vadd.f32 %v379, 1.0
    %v391 = vadd.f32 %v381, 1.0
    %v392 = vrcp.pop %v382
    %v393 = vmul.f32 1.0, %v392
    %v394 = vrcp.pop %v383
    %v395 = vmul.f32 1.0, %v394
    %v396 = vrcp.pop %v384
    %v397 = vmul.f32 1.0, %v396
    %v398 = vrcp.pop %v385
    %v399 = vmul.f32 1.0, %v398
    %v400 = vrcp.pop %v386
    %v401 = vmul.f32 1.0, %v400
    %v402 = vrcp.pop %v387
    %v403 = vmul.f32 1.0, %v402
    %v404 = vrcp.pop %v388
    %v405 = vmul.f32 1.0, %v404
    %v406 = vrcp.pop %v389
    %v407 = vmul.f32 1.0, %v406
    %v408 = vrcp.pop %v390
    %v409 = vmul.f32 1.0, %v408
    %v410 = vrcp.pop %v391
    %v411 = vmul.f32 1.0, %v410
    %v414 = vcombine.low %v393, %v395
    %s416 = scalar_lea.vmem [#allocation2], 8
    %417 = vst [vmem:[%s416] sm:$0xff] %v414
    %s418 = scalar_lea.vmem [#allocation4], 48
    %419 = vst [vmem:[%s418] sm:$0xff] %v397
    %420 = vst [vmem:[%s418 + $0x8] sm:$0xff] %v399
    %421 = vst [vmem:[%s418 + $0x10] sm:$0xff] %v401
    %422 = vst [vmem:[%s418 + $0x18] sm:$0xff] %v403
    %423 = vst [vmem:[%s418 + $0x20] sm:$0xff] %v405
    %424 = vst [vmem:[%s418 + $0x28] sm:$0xff] %v407
    %v427 = vcombine.low %v409, %v411
    %s429 = scalar_lea.vmem %s5, 8
    %430 = vst [vmem:[%s429] sm:$0x77] %v427
    // Predicated region
    $region14: #{tpu_custom_call.1} parent=1 // pred_check
      _
    $region15: #{tpu_custom_call.1} parent=1 // pred_check_branch
      %432 = sbr.rel (0) target = $region17
    $region16: #{tpu_custom_call.1} parent=1 // pred_region
      %s434 = ssub.s32 256, 256
      %435 = vsyncadd [#allocation3], %s434
      %s436 = sshll.u32 [#allocation2], 4
      %s437 = int_to_ptr.vmem [resolvable:$true] %s436
      %442 = dma.vmem_to_hbm [thread:$0]  %s437, 256, %s3, [#allocation3], 128, 128, 8
    $region17: #{tpu_custom_call.1} parent=1 // pred_fallthru
      _
    // Predicated region
    $region18: #{tpu_custom_call.1} parent=1 // pred_check
      _
    $region19: #{tpu_custom_call.1} parent=1 // pred_check_branch
      %444 = sbr.rel (0) target = $region21
    $region20: #{tpu_custom_call.1} parent=1 // pred_region
      %s446 = ssub.s32 1536, 1536
      %447 = vsyncadd [#allocation5], %s446
      %s448 = sshll.u32 [#allocation4], 4
      %s449 = int_to_ptr.vmem [resolvable:$true] %s448
      %454 = dma.vmem_to_hbm [thread:$0]  %s449, 1536, %s4, [#allocation5], 256, 256, 16
    $region21: #{tpu_custom_call.1} parent=1 // pred_fallthru
      _
    // Predicated region
    $region22: #{tpu_custom_call.1} parent=1 // pred_check
      _
    $region23: #{tpu_custom_call.1} parent=1 // pred_check_branch
      %456 = sbr.rel (0) target = $region25
    $region24: #{tpu_custom_call.1} parent=1 // pred_region
      _
    $region25: #{tpu_custom_call.1} parent=1 // pred_fallthru
      _
    // Predicated region
    $region26: #{tpu_custom_call.1} parent=1 // pred_check
      _
    $region27: #{tpu_custom_call.1} parent=1 // pred_check_branch
      %458 = sbr.rel (0) target = $region29
    $region28: #{tpu_custom_call.1} parent=1 // pred_region
      %459 = dma.done [#allocation3], 256
    $region29: #{tpu_custom_call.1} parent=1 // pred_fallthru
      _
    // Predicated region
    $region30: #{tpu_custom_call.1} parent=1 // pred_check
      _
    $region31: #{tpu_custom_call.1} parent=1 // pred_check_branch
      %461 = sbr.rel (0) target = $region33
    $region32: #{tpu_custom_call.1} parent=1 // pred_region
      %462 = dma.done [#allocation5], 1536
    $region33: #{tpu_custom_call.1} parent=1 // pred_fallthru
      _
    // Predicated region
    $region34: #{tpu_custom_call.1} parent=1 // pred_check
      _
    $region35: #{tpu_custom_call.1} parent=1 // pred_check_branch
      %464 = sbr.rel (0) target = $region37
    $region36: #{tpu_custom_call.1} parent=1 // pred_region
      _
    $region37: #{tpu_custom_call.1} parent=1 // pred_fallthru
      _
    %465 = vsyncpa [#allocation3], 1
    %466 = vsyncpa [#allocation5], 1

</llo_original>
